<compile_context>
chip_gen: v7x
topology: tpu7x:2x2x1
jax: 0.10.0
libtpu: 0.0.40
codegen_flags: <defaults>
</compile_context>

<pallas_src>
import jax
import jax.numpy as jnp
from jax.experimental import pallas as pl
from jax.experimental.pallas import tpu as pltpu


def _self_attention_kernel(x_ref, w1_ref, b1_ref, w2_ref, out_ref, wts_ref):
    # x_ref  : (BB, T, H)  encoder outputs for this batch block
    # w1_ref : (H, 64), b1_ref: (1, 64), w2_ref: (1, 64)  (row form of (64,1))
    # out_ref: (BB, H), wts_ref: (BB, T)   -- lane-dense 2-D outputs
    bb, t = wts_ref.shape
    h = out_ref.shape[-1]
    k = w1_ref.shape[-1]

    x3 = x_ref[...]                                   # (BB, T, H)
    x2 = x3.reshape(bb * t, h)                        # leading-dim merge, lanes stay H

    # ---- Linear(H, 64) + ReLU: ONE MXU matmul over all BB*T rows -----------
    # TODO(synk): optionally cast x/w1 to bf16 on v6e/v7x; kept f32 for 1e-5 parity.
    hid = jnp.dot(x2, w1_ref[...], preferred_element_type=jnp.float32)
    hid = jnp.maximum(hid + b1_ref[...], 0.0)         # (BB*T, 64)
    hid3 = hid.reshape(bb, t, k)                      # leading-dim split, lanes stay 64

    # ---- Linear(64, 1) batched across the whole block ----------------------
    # Broadcast-multiply + lane reduce yields a lane-dense (BB, T) energy tile
    # directly (no per-row M=1 matmuls, no lane<->sublane relayout of the
    # energies).  b2 is omitted: softmax over T is shift-invariant.
    e = jnp.sum(hid3 * w2_ref[...], axis=-1)          # (BB, T)

    # ---- softmax over the sequence axis, all BB rows at once ---------------
    m = jnp.max(e, axis=-1, keepdims=True)            # (BB, 1)
    p = jnp.exp(e - m)                                 # (BB, T) unnormalized
    s = jnp.sum(p, axis=-1, keepdims=True)             # (BB, 1)
    r = pl.reciprocal(s, approx=True)                  # EUP slot
    r = r * (2.0 - s * r)                              # one Newton step -> f32 accurate
    w = p * r                                           # (BB, T) normalized weights

    # ---- weighted sum over T (vectorized over the whole block) -------------
    out = jnp.sum(x3 * w[:, :, None], axis=1)          # (BB, H)

    # ---- one dense store per output tile ------------------------------------
    out_ref[...] = out.astype(out_ref.dtype)
    wts_ref[...] = w.astype(wts_ref.dtype)


def _vmem_capacity_bytes():
    try:
        info = pltpu.get_tpu_info()
        cap = getattr(info, "vmem_capacity_bytes", None)
        if cap:
            return int(cap)
    except Exception:
        pass
    return 64 << 20          # conservative fallback (v7x-sized)


def _block_bytes(bb, t, h, k=64):
    """Approximate per-grid-step VMEM working set (f32 bytes)."""
    x_tile = bb * t * h * 4
    hid = bb * t * k * 4
    outs = bb * (h + t) * 4
    params = (h * k + 2 * k) * 4
    # x tile and outputs are double-buffered by the pipeline; hid plus one
    # temporary of the same size live once; parameters stay resident.
    return 2 * x_tile + 3 * hid + 2 * outs + 2 * params


def _pick_block_b(B, T, H):
    """Batch rows folded into one grid step."""
    budget = _vmem_capacity_bytes() // 3      # headroom for Mosaic internal scratch
    # Prefer >= 2 grid steps (megacore sharding on v7x) with BB a multiple of 8
    # so the (BB, H)/(BB, T) output blocks satisfy the (8, 128) tiling rule.
    cands = sorted((bb for bb in range(8, B // 2 + 1, 8) if B % bb == 0),
                   reverse=True)
    for bb in cands:
        if _block_bytes(bb, T, H) <= budget:
            return bb
    return B    # small / odd batches: whole batch in one step (full-dim blocks)


def self_attention(x, w1, b1, w2, b2=None, *, block_b=None):
    """x: (B, T, H) float32. Returns (outputs (B, H), weights (B, T)).

    b2 is accepted for API fidelity with the PyTorch module but never used:
    softmax is shift-invariant, so it affects neither output.
    """
    del b2
    B, T, H = x.shape
    K = w1.shape[1]                       # 64
    BB = _pick_block_b(B, T, H) if block_b is None else block_b
    assert B % BB == 0, "batch block must divide the batch"
    assert BB == B or BB % 8 == 0, "partial batch blocks must be a multiple of 8"

    b1_row = b1.reshape(1, K)
    w2_row = w2.reshape(1, K)             # lane-dense row form of (64, 1)

    cap = _vmem_capacity_bytes()
    need = _block_bytes(BB, T, H, K)
    vmem_limit = int(min(cap // 2, max(16 << 20, need + need // 2)))

    grid = (B // BB,)

    out, wts = pl.pallas_call(
        _self_attention_kernel,
        out_shape=(
            jax.ShapeDtypeStruct((B, H), jnp.float32),   # outputs
            jax.ShapeDtypeStruct((B, T), jnp.float32),   # weights
        ),
        grid_spec=pltpu.PrefetchScalarGridSpec(
            num_scalar_prefetch=0,
            grid=grid,
            in_specs=[
                pl.BlockSpec((BB, T, H), lambda i: (i, 0, 0)),   # x block
                # Constant operands (index_map is constant; a single buffer via
                # pipeline_mode=pl.Buffered(1) would save a little VMEM on
                # newer JAX — kept at the default for compatibility).
                pl.BlockSpec((H, K), lambda i: (0, 0)),          # W1
                pl.BlockSpec((1, K), lambda i: (0, 0)),          # b1 row
                pl.BlockSpec((1, K), lambda i: (0, 0)),          # W2 row
            ],
            out_specs=[
                pl.BlockSpec((BB, H), lambda i: (i, 0)),         # outputs
                pl.BlockSpec((BB, T), lambda i: (i, 0)),         # weights
            ],
        ),
        compiler_params=pltpu.CompilerParams(
            dimension_semantics=("parallel",),
            vmem_limit_bytes=vmem_limit,
        ),
    )(x, w1, b1_row, w2_row)

    return out, wts


def _reference(x, w1, b1, w2, b2):
    h = jnp.maximum(x @ w1 + b1, 0.0)
    e = (h @ w2 + b2)[..., 0]                      # (B, T)
    w = jax.nn.softmax(e, axis=1)                  # (B, T)
    o = jnp.sum(x * w[..., None], axis=1)          # (B, H)
    return o, w


if __name__ == "__main__":
    B, T, H = 2, 8, 32   # batch, seq, hidden_dim

    key = jax.random.PRNGKey(0)
    kx, k1, k2, k3, k4 = jax.random.split(key, 5)

    x = jax.random.normal(kx, (B, T, H), dtype=jnp.float32)

    # Deterministic parameter init mirroring nn.Linear's uniform(-1/sqrt(fan_in), ...)
    lim1 = 1.0 / (H ** 0.5)
    lim2 = 1.0 / (64 ** 0.5)
    w1 = jax.random.uniform(k1, (H, 64), jnp.float32, -lim1, lim1)
    b1 = jax.random.uniform(k2, (64,), jnp.float32, -lim1, lim1)
    w2 = jax.random.uniform(k3, (64, 1), jnp.float32, -lim2, lim2)
    b2 = jax.random.uniform(k4, (1,), jnp.float32, -lim2, lim2)

    outputs, weights = self_attention(x, w1, b1, w2, b2)
    jax.block_until_ready((outputs, weights))

    ref_out, ref_wts = _reference(x, w1, b1, w2, b2)
    assert jnp.allclose(outputs, ref_out, atol=1e-5, rtol=1e-5), "outputs mismatch"
    assert jnp.allclose(weights, ref_wts, atol=1e-5, rtol=1e-5), "weights mismatch"

    print("KERNEL_OK")
</pallas_src>

<mosaic_0001>
module attributes {stable_mosaic.version = 11 : i64} {
  func.func @_self_attention_kernel(%arg0: i32, %arg1: memref<2x8x32xf32, #tpu.memory_space<vmem>>, %arg2: memref<32x64xf32, #tpu.memory_space<vmem>>, %arg3: memref<1x64xf32, #tpu.memory_space<vmem>>, %arg4: memref<1x64xf32, #tpu.memory_space<vmem>>, %arg5: memref<2x32xf32, #tpu.memory_space<vmem>>, %arg6: memref<2x8xf32, #tpu.memory_space<vmem>>) attributes {dimension_semantics = [#tpu.dimension_semantics<parallel>], iteration_bounds = array<i64: 1>, scalar_prefetch = 0 : i64, scratch_operands = 0 : i64, tpu.core_type = #tpu.core_type<tc>, window_params = [{transform_indices = @transform_0, window_bounds = array<i64: 2, 8, 32>}, {pipeline_mode = #tpu.pipeline_mode<synchronous>, transform_indices = @transform_1, window_bounds = array<i64: 32, 64>}, {pipeline_mode = #tpu.pipeline_mode<synchronous>, transform_indices = @transform_2, window_bounds = array<i64: 1, 64>}, {pipeline_mode = #tpu.pipeline_mode<synchronous>, transform_indices = @transform_3, window_bounds = array<i64: 1, 64>}, {transform_indices = @transform_4, window_bounds = array<i64: 2, 32>}, {transform_indices = @transform_5, window_bounds = array<i64: 2, 8>}]} {
    %c0 = arith.constant 0 : index
    %c0_0 = arith.constant 0 : index
    %c0_1 = arith.constant 0 : index
    %0 = vector.load %arg1[%c0, %c0_0, %c0_1] : memref<2x8x32xf32, #tpu.memory_space<vmem>>, vector<2x8x32xf32>
    %1 = vector.shape_cast %0 : vector<2x8x32xf32> to vector<16x32xf32>
    %c0_2 = arith.constant 0 : index
    %c0_3 = arith.constant 0 : index
    %2 = vector.load %arg2[%c0_2, %c0_3] : memref<32x64xf32, #tpu.memory_space<vmem>>, vector<32x64xf32>
    %cst = arith.constant dense<0.000000e+00> : vector<16x64xf32>
    %3 = tpu.matmul %1, %2, %cst {dimension_numbers = #tpu.dot_dimension_numbers<[1], [0], [0], [1], [0, 0, 1, 1], [], []>} : vector<16x32xf32>, vector<32x64xf32>, vector<16x64xf32> -> vector<16x64xf32>
    %c0_4 = arith.constant 0 : index
    %c0_5 = arith.constant 0 : index
    %4 = vector.load %arg3[%c0_4, %c0_5] : memref<1x64xf32, #tpu.memory_space<vmem>>, vector<1x64xf32>
    %5 = vector.broadcast %4 : vector<1x64xf32> to vector<16x64xf32>
    %6 = arith.addf %3, %5 : vector<16x64xf32>
    %cst_6 = arith.constant 0.000000e+00 : f32
    %7 = vector.broadcast %cst_6 : f32 to vector<16x64xf32>
    %8 = arith.maximumf %6, %7 : vector<16x64xf32>
    %9 = vector.shape_cast %8 : vector<16x64xf32> to vector<2x8x64xf32>
    %c0_7 = arith.constant 0 : index
    %c0_8 = arith.constant 0 : index
    %10 = vector.load %arg4[%c0_7, %c0_8] : memref<1x64xf32, #tpu.memory_space<vmem>>, vector<1x64xf32>
    %11 = vector.shape_cast %10 : vector<1x64xf32> to vector<1x1x64xf32>
    %12 = vector.broadcast %11 : vector<1x1x64xf32> to vector<2x8x64xf32>
    %13 = arith.mulf %9, %12 : vector<2x8x64xf32>
    %cst_9 = arith.constant dense<0.000000e+00> : vector<2x8xf32>
    %14 = vector.multi_reduction <add>, %13, %cst_9 [2] : vector<2x8x64xf32> to vector<2x8xf32>
    %cst_10 = arith.constant dense<0xFF800000> : vector<2xf32>
    %15 = vector.multi_reduction <maximumf>, %14, %cst_10 [1] : vector<2x8xf32> to vector<2xf32>
    %16 = vector.shape_cast %15 : vector<2xf32> to vector<2x1xf32>
    %17 = vector.broadcast %16 : vector<2x1xf32> to vector<2x8xf32>
    %18 = arith.subf %14, %17 : vector<2x8xf32>
    %19 = math.exp %18 : vector<2x8xf32>
    %cst_11 = arith.constant dense<0.000000e+00> : vector<2xf32>
    %20 = vector.multi_reduction <add>, %19, %cst_11 [1] : vector<2x8xf32> to vector<2xf32>
    %21 = vector.shape_cast %20 : vector<2xf32> to vector<2x1xf32>
    %22 = tpu.reciprocal %21 {approx = true} : vector<2x1xf32> -> vector<2x1xf32>
    %23 = arith.mulf %21, %22 : vector<2x1xf32>
    %cst_12 = arith.constant 2.000000e+00 : f32
    %24 = vector.broadcast %cst_12 : f32 to vector<2x1xf32>
    %25 = arith.subf %24, %23 : vector<2x1xf32>
    %26 = arith.mulf %22, %25 : vector<2x1xf32>
    %27 = vector.broadcast %26 : vector<2x1xf32> to vector<2x8xf32>
    %28 = arith.mulf %19, %27 : vector<2x8xf32>
    %29 = vector.shape_cast %28 : vector<2x8xf32> to vector<2x8x1xf32>
    %30 = vector.broadcast %29 : vector<2x8x1xf32> to vector<2x8x32xf32>
    %31 = arith.mulf %0, %30 : vector<2x8x32xf32>
    %cst_13 = arith.constant dense<0.000000e+00> : vector<2x32xf32>
    %32 = vector.multi_reduction <add>, %31, %cst_13 [1] : vector<2x8x32xf32> to vector<2x32xf32>
    %c0_14 = arith.constant 0 : index
    %c0_15 = arith.constant 0 : index
    %33 = vector.load %arg5[%c0_14, %c0_15] : memref<2x32xf32, #tpu.memory_space<vmem>>, vector<2x32xf32>
    tpu.vector_store %arg5[%c0_14, %c0_15], %32 {strides = array<i32>} : memref<2x32xf32, #tpu.memory_space<vmem>>, vector<2x32xf32>,
    %c0_16 = arith.constant 0 : index
    %c0_17 = arith.constant 0 : index
    %34 = vector.load %arg6[%c0_16, %c0_17] : memref<2x8xf32, #tpu.memory_space<vmem>>, vector<2x8xf32>
    tpu.vector_store %arg6[%c0_16, %c0_17], %28 {strides = array<i32>} : memref<2x8xf32, #tpu.memory_space<vmem>>, vector<2x8xf32>,
    return
  }
  func.func @transform_0(%arg0: i32) -> (i32, i32, i32) {
    %c0_i32 = arith.constant 0 : i32
    %c0_i32_0 = arith.constant 0 : i32
    %c0_i32_1 = arith.constant 0 : i32
    return %arg0, %c0_i32, %c0_i32_0 : i32, i32, i32
  }
  func.func @transform_1(%arg0: i32) -> (i32, i32) {
    %c0_i32 = arith.constant 0 : i32
    %c0_i32_0 = arith.constant 0 : i32
    %c0_i32_1 = arith.constant 0 : i32
    return %c0_i32, %c0_i32_0 : i32, i32
  }
  func.func @transform_2(%arg0: i32) -> (i32, i32) {
    %c0_i32 = arith.constant 0 : i32
    %c0_i32_0 = arith.constant 0 : i32
    %c0_i32_1 = arith.constant 0 : i32
    return %c0_i32, %c0_i32_0 : i32, i32
  }
  func.func @transform_3(%arg0: i32) -> (i32, i32) {
    %c0_i32 = arith.constant 0 : i32
    %c0_i32_0 = arith.constant 0 : i32
    %c0_i32_1 = arith.constant 0 : i32
    return %c0_i32, %c0_i32_0 : i32, i32
  }
  func.func @transform_4(%arg0: i32) -> (i32, i32) {
    %c0_i32 = arith.constant 0 : i32
    %c0_i32_0 = arith.constant 0 : i32
    return %arg0, %c0_i32 : i32, i32
  }
  func.func @transform_5(%arg0: i32) -> (i32, i32) {
    %c0_i32 = arith.constant 0 : i32
    %c0_i32_0 = arith.constant 0 : i32
    return %arg0, %c0_i32 : i32, i32
  }
}

</mosaic_0001>

<llo_original>
// kernel: tpu_custom_call.1
$region0: #{tpu_custom_call.1}
  #allocation0 [shape = 'u32[]', space=smem, size = 0x4, offset = 0x4, fixed_abs, tag = 'smem constant byte address 0x4 - core index']
  #allocation1 [shape = 'u32[144,128]{1,0:T(1,128)}', space=vmem, size = 0x12000, scoped, tag = 'internal scratch']
  %s0 = inlined_call_operand.hbm [shape: f32[2,8,32], index: 0, kind: input, shape index: {}]
  %s1 = inlined_call_operand.hbm [shape: f32[32,64], index: 1, kind: input, shape index: {}]
  %s2 = inlined_call_operand.vmem [shape: f32[1,64], index: 2, kind: input, shape index: {}]
  %s3 = inlined_call_operand.vmem [shape: f32[1,64], index: 3, kind: input, shape index: {}]
  %s4 = inlined_call_operand.hbm [shape: f32[2,32], index: 4, kind: output, shape index: {0}]
  %s5 = inlined_call_operand.hbm [shape: f32[2,8], index: 5, kind: output, shape index: {1}]
  %6 = xla_tuple %s4, %s5
  %s7 = sld [smem:[#allocation0]]
  $region42: #{tpu_custom_call.1} parent=0
    _
  %s9 = ssub.s32 1, %s7
  %s10 = scalar_select 0, %s9, %s7
  $region1: #{tpu_custom_call.1} parent=0
    #allocation2 [shape = 'u8[8192]{0}', space=vmem, size = 0x2000, scoped, tag = 'input window, operand 0, single buffered']
    #allocation3 [shape = 's32[1]{0}', space=sflag, size = 0x4, scoped, tag = 'scoped memory for tpu_custom_call.1']
    #allocation4 [shape = 's32[1]{0}', space=sflag, size = 0x4, scoped, tag = 'scoped memory for tpu_custom_call.1']
    #allocation5 [shape = 'u8[16384]{0}', space=vmem, size = 0x4000, scoped, tag = 'input window, operand 1, single buffered']
    #allocation6 [shape = 's32[1]{0}', space=sflag, size = 0x4, scoped, tag = 'scoped memory for tpu_custom_call.1']
    #allocation7 [shape = 'u8[1024]{0}', space=vmem, size = 0x400, scoped, tag = 'output window, operand 0, single buffered']
    #allocation8 [shape = 'u8[1024]{0}', space=vmem, size = 0x400, scoped, tag = 'output window, operand 1, single buffered']
    #allocation9 [shape = 's32[1]{0}', space=sflag, size = 0x4, scoped, tag = 'scoped memory for tpu_custom_call.1']
    %11 = vsyncpa [#allocation3], 0
    %12 = vsyncpa [#allocation6], 0
    %13 = vsyncpa [#allocation4], 0
    %14 = vsyncpa [#allocation9], 0
    // Predicated region
    $region2: #{tpu_custom_call.1} parent=1 // pred_check
      _
    $region3: #{tpu_custom_call.1} parent=1 // pred_check_branch
      %16 = sbr.rel (0) target = $region5
    $region4: #{tpu_custom_call.1} parent=1 // pred_region
      %s18 = ssub.s32 256, 256
      %19 = vsyncadd [#allocation3], %s18
      %s20 = sshll.u32 [#allocation2], 4
      %s21 = int_to_ptr.vmem [resolvable:$true] %s20
      %26 = dma.hbm_to_vmem [thread:$0]  %s0, 256, %s21, [#allocation3], 128, 128, 8
    $region5: #{tpu_custom_call.1} parent=1 // pred_fallthru
      _
    // Predicated region
    $region6: #{tpu_custom_call.1} parent=1 // pred_check
      _
    $region7: #{tpu_custom_call.1} parent=1 // pred_check_branch
      %28 = sbr.rel (0) target = $region9
    $region8: #{tpu_custom_call.1} parent=1 // pred_region
      %s30 = ssub.s32 512, 512
      %31 = vsyncadd [#allocation6], %s30
      %s32 = sshll.u32 [#allocation5], 4
      %s33 = int_to_ptr.vmem [resolvable:$true] %s32
      %38 = dma.hbm_to_vmem [thread:$0]  %s1, 512, %s33, [#allocation6], 128, 128, 8
    $region9: #{tpu_custom_call.1} parent=1 // pred_fallthru
      _
    // Predicated region
    $region10: #{tpu_custom_call.1} parent=1 // pred_check
      _
    $region11: #{tpu_custom_call.1} parent=1 // pred_check_branch
      %40 = sbr.rel (0) target = $region13
    $region12: #{tpu_custom_call.1} parent=1 // pred_region
      _
    $region13: #{tpu_custom_call.1} parent=1 // pred_fallthru
      _
    // Predicated region
    $region14: #{tpu_custom_call.1} parent=1 // pred_check
      _
    $region15: #{tpu_custom_call.1} parent=1 // pred_check_branch
      %42 = sbr.rel (0) target = $region17
    $region16: #{tpu_custom_call.1} parent=1 // pred_region
      _
    $region17: #{tpu_custom_call.1} parent=1 // pred_fallthru
      _
    // Predicated region
    $region18: #{tpu_custom_call.1} parent=1 // pred_check
      _
    $region19: #{tpu_custom_call.1} parent=1 // pred_check_branch
      %44 = sbr.rel (0) target = $region21
    $region20: #{tpu_custom_call.1} parent=1 // pred_region
      %45 = dma.done [#allocation3], 256
    $region21: #{tpu_custom_call.1} parent=1 // pred_fallthru
      _
    // Predicated region
    $region22: #{tpu_custom_call.1} parent=1 // pred_check
      _
    $region23: #{tpu_custom_call.1} parent=1 // pred_check_branch
      %47 = sbr.rel (0) target = $region25
    $region24: #{tpu_custom_call.1} parent=1 // pred_region
      %48 = dma.done [#allocation6], 512
    $region25: #{tpu_custom_call.1} parent=1 // pred_fallthru
      _
    %v49 = vld [vmem:[#allocation2] sm:$0xff]
    %v50 = vld [vmem:[#allocation2 + $0x8] sm:$0xff]
    %v51 = vld [vmem:[#allocation5] sm:$0xff]
    %v52 = vld [vmem:[#allocation5 + $0x8] sm:$0xff]
    %v53 = vld [vmem:[#allocation5 + $0x10] sm:$0xff]
    %v54 = vld [vmem:[#allocation5 + $0x18] sm:$0xff]
    %v55 = vld [vmem:[%s2] sm:$0x1]
    %v57 = vlaneseq
    %v58 = vshrl.u32 %v57, 7
    %v59 = vsub.s32 0, %v58
    %v60 = vrot.slane %v55, %v59
    %vm62 = vcmask 261120
    %v64 = vsel %vm62, %v49, 0
    %v67 = vsel %vm62, %v50, 0
    %69 = vmatprep.subr.mxu0 0.0
    %70 = vmatpush1.msra.mxu0 %v51
    %71 = vmatprep.subr.mxu0 0.0
    %72 = vmatpush1.msra.mxu0 %v52
    %73 = vmatprep.subr.mxu0 0.0
    %74 = vmatpush1.msra.mxu0 %v53
    %75 = vmatprep.subr.mxu0 0.0
    %76 = vmatpush1.msra.mxu0 %v54
    %77 = vmatprep.subr.mxu0 0.0
    %78 = vmatpush1.msra.mxu0 0.0
    %79 = vmatprep.subr.mxu0 0.0
    %80 = vmatpush1.msra.mxu0 0.0
    %81 = vmatprep.subr.mxu0 0.0
    %82 = vmatpush1.msra.mxu0 0.0
    %83 = vmatprep.subr.mxu0 0.0
    %84 = vmatpush1.msra.mxu0 0.0
    %85 = vmatprep.subr.mxu0 0.0
    %86 = vmatpush1.msra.mxu0 0.0
    %87 = vmatprep.subr.mxu0 0.0
    %88 = vmatpush1.msra.mxu0 0.0
    %89 = vmatprep.subr.mxu0 0.0
    %90 = vmatpush1.msra.mxu0 0.0
    %91 = vmatprep.subr.mxu0 0.0
    %92 = vmatpush1.msra.mxu0 0.0
    %93 = vmatprep.subr.mxu0 0.0
    %94 = vmatpush1.msra.mxu0 0.0
    %95 = vmatprep.subr.mxu0 0.0
    %96 = vmatpush1.msra.mxu0 0.0
    %97 = vmatprep.subr.mxu0 0.0
    %98 = vmatpush1.msra.mxu0 0.0
    %99 = vmatprep.subr.mxu0 0.0
    %100 = vmatpush1.msra.mxu0 0.0
    %101 = vmatprep.subr.mxu0 0.0
    %102 = vmatpush1.msra.mxu0 0.0
    %103 = vmatprep.subr.mxu0 0.0
    %104 = vmatpush1.msra.mxu0 0.0
    %105 = vmatprep.subr.mxu0 0.0
    %106 = vmatpush1.msra.mxu0 0.0
    %107 = vmatprep.subr.mxu0 0.0
    %108 = vmatpush1.msra.mxu0 0.0
    %109 = vmatprep.subr.mxu0 0.0
    %110 = vmatpush1.msra.mxu0 0.0
    %111 = vmatprep.subr.mxu0 0.0
    %112 = vmatpush1.msra.mxu0 0.0
    %113 = vmatprep.subr.mxu0 0.0
    %114 = vmatpush1.msra.mxu0 0.0
    %115 = vmatprep.subr.mxu0 0.0
    %116 = vmatpush1.msra.mxu0 0.0
    %117 = vmatprep.subr.mxu0 0.0
    %118 = vmatpush1.msra.mxu0 0.0
    %119 = vmatprep.subr.mxu0 0.0
    %120 = vmatpush1.msra.mxu0 0.0
    %121 = vmatprep.subr.mxu0 0.0
    %122 = vmatpush1.msra.mxu0 0.0
    %123 = vmatprep.subr.mxu0 0.0
    %124 = vmatpush1.msra.mxu0 0.0
    %125 = vmatprep.subr.mxu0 0.0
    %126 = vmatpush1.msra.mxu0 0.0
    %127 = vmatprep.subr.mxu0 0.0
    %128 = vmatpush1.msra.mxu0 0.0
    %129 = vmatprep.subr.mxu0 0.0
    %130 = vmatpush1.msra.mxu0 0.0
    %131 = vmatprep.subr.mxu0 0.0
    %132 = vmatpush1.msra.mxu0 0.0
    %133 = vmatprep.mubr.f32.mxu0 0.0
    %134 = vmatmul.mubr.f32.gmra.mrb[0].mxu0 %v64
    %v135 = vpop.f32.mrb[0].mxu0
    %v136 = vadd.f32 %v60, %v135
    %v137 = vpop.f32.mrb[0].mxu0
    %138 = vmatprep.mubr.f32.mxu0 0.0
    %139 = vmatmul.mubr.f32.gmra.mrb[0].mxu0 %v67
    %v140 = vpop.f32.mrb[0].mxu0
    %v141 = vadd.f32 %v60, %v140
    %v142 = vpop.f32.mrb[0].mxu0
    %143 = vdwg.mxu0
    %v144 = vmax.f32 %v136, 0.0
    %v145 = vmax.f32 %v141, 0.0
    %v146 = vld [vmem:[%s3] sm:$0x1]
    %v148 = vlaneseq
    %v149 = vshrl.u32 %v148, 7
    %v150 = vsub.s32 0, %v149
    %v151 = vrot.slane %v146, %v150
    %v153 = vmul.f32 %v144, %v151
    %v154 = vmul.f32 %v145, %v151
    %vm155 = vcmask 523264
    %v156 = vsel %vm155, %v153, 0.0
    %157 = vadd.xlane.f32.xlu0 %v156
    %v158 = vpop.xlane.xlu0 %157
    %v159 = vsel %vm155, %v154, 0.0
    %160 = vadd.xlane.f32.xlu0 %v159
    %v161 = vpop.xlane.xlu0 %160
    %v164 = vlaneseq
    %v165 = vand.u32 %v164, 127
    %v166 = vlaneseq
    %v167 = vshrl.u32 %v166, 7
    %v168 = vsub.s32 %v165, %v167
    %v169 = vrot.slane %v158, %v168
    %v170 = vlaneseq
    %v171 = vshrl.u32 %v170, 7
    %v172 = vsub.s32 %v165, %v171
    %v173 = vrot.slane %v161, %v172
    %vm174 = vcmask 1041409
    %v175 = vsel %vm174, %v173, %v169
    %vm177 = vcmask 58368
    %v178 = vsel %vm177, %v175, -inf
    %179 = vmax.xlane.f32.xlu0 %v178
    %v180 = vpop.xlane.xlu0 %179
    %v182 = vlaneseq
    %v183 = vshrl.u32 %v182, 7
    %v184 = vsub.s32 0, %v183
    %v185 = vrot.slane %v180, %v184
    %v186 = vlaneseq
    %v187 = vshrl.u32 %v186, 7
    %v188 = vsub.s32 1, %v187
    %v189 = vrot.slane %v180, %v188
    %v192 = vsub.f32 %v158, %v185
    %v193 = vsub.f32 %v161, %v189
    %v194 = vmul.f32 %v192, 1.442695
    %v195 = vpow.pop %v194
    %v196 = vmul.f32 %v193, 1.442695
    %v197 = vpow.pop %v196
    %200 = vset.pattern.permute.xlu0 0
    %201 = vperm.xlu0 %200, %v195
    %v202 = vpop.permute.xlu0 %201
    %203 = vset.pattern.permute.xlu0 0
    %204 = vperm.xlu0 %203, %v197
    %v205 = vpop.permute.xlu0 %204
    %v206 = vlaneseq
    %v207 = vshrl.u32 %v206, 7
    %v208 = vsub.s32 %v165, %v207
    %v209 = vrot.slane %v202, %v208
    %v210 = vlaneseq
    %v211 = vshrl.u32 %v210, 7
    %v212 = vsub.s32 %v165, %v211
    %v213 = vrot.slane %v205, %v212
    %v214 = vsel %vm174, %v213, %v209
    %v216 = vsel %vm177, %v214, 0.0
    %217 = vadd.xlane.f32.xlu0 %v216
    %v218 = vpop.xlane.xlu0 %217
    %v219 = vrcp.pop %v218
    %v220 = vmul.f32 %v218, %v219
    %v221 = vsub.f32 2.0, %v220
    %v222 = vmul.f32 %v219, %v221
    %v224 = vlaneseq
    %v225 = vshrl.u32 %v224, 7
    %v226 = vsub.s32 0, %v225
    %v227 = vrot.slane %v222, %v226
    %v228 = vlaneseq
    %v229 = vshrl.u32 %v228, 7
    %v230 = vsub.s32 1, %v229
    %v231 = vrot.slane %v222, %v230
    %v234 = vmul.f32 %v195, %v227
    %v235 = vmul.f32 %v197, %v231
    %237 = vset.pattern.permute.xlu0 0
    %238 = vperm.xlu0 %237, %v234
    %v239 = vpop.permute.xlu0 %238
    %242 = vset.pattern.permute.xlu0 0
    %243 = vperm.xlu0 %242, %v235
    %v244 = vpop.permute.xlu0 %243
    %v246 = vmul.f32 %v49, %v239
    %v247 = vmul.f32 %v50, %v244
    %v248 = vsel %vm62, %v246, 0.0
    %v249 = vrot.slane %v248, 4
    %v250 = vadd.f32 %v248, %v249
    %v251 = vrot.slane %v250, 2
    %v252 = vadd.f32 %v250, %v251
    %v253 = vrot.slane %v252, 1
    %v254 = vadd.f32 %v252, %v253
    %v255 = vsel %vm62, %v247, 0.0
    %v256 = vrot.slane %v255, 4
    %v257 = vadd.f32 %v255, %v256
    %v258 = vrot.slane %v257, 2
    %v259 = vadd.f32 %v257, %v258
    %v260 = vrot.slane %v259, 1
    %v261 = vadd.f32 %v259, %v260
    %v264 = vsel %vm174, %v261, %v254
    %vm266 = vcmask 254976
    %267 = vst.msk [vmem:[#allocation7] sm:$0x3] %vm266, %v264
    %v268 = vlaneseq
    %v269 = vshrl.u32 %v268, 7
    %v270 = vsub.s32 %v165, %v269
    %v271 = vrot.slane %v239, %v270
    %v272 = vlaneseq
    %v273 = vshrl.u32 %v272, 7
    %v274 = vsub.s32 %v165, %v273
    %v275 = vrot.slane %v244, %v274
    %v276 = vsel %vm174, %v275, %v271
    %278 = vst.msk [vmem:[#allocation8] sm:$0x3] %vm177, %v276
    // Predicated region
    $region26: #{tpu_custom_call.1} parent=1 // pred_check
      _
    $region27: #{tpu_custom_call.1} parent=1 // pred_check_branch
      %280 = sbr.rel (0) target = $region29
    $region28: #{tpu_custom_call.1} parent=1 // pred_region
      %s282 = ssub.s32 32, 32
      %283 = vsyncadd [#allocation4], %s282
      %s285 = sshll.u32 [#allocation7], 4
      %s286 = int_to_ptr.vmem [resolvable:$true] %s285
      %288 = dma.vmem_to_hbm [thread:$0]  %s286, 32, %s4, [#allocation4]
    $region29: #{tpu_custom_call.1} parent=1 // pred_fallthru
      _
    // Predicated region
    $region30: #{tpu_custom_call.1} parent=1 // pred_check
      _
    $region31: #{tpu_custom_call.1} parent=1 // pred_check_branch
      %290 = sbr.rel (0) target = $region33
    $region32: #{tpu_custom_call.1} parent=1 // pred_region
      %s292 = ssub.s32 32, 32
      %293 = vsyncadd [#allocation9], %s292
      %s295 = sshll.u32 [#allocation8], 4
      %s296 = int_to_ptr.vmem [resolvable:$true] %s295
      %298 = dma.vmem_to_hbm [thread:$0]  %s296, 32, %s5, [#allocation9]
    $region33: #{tpu_custom_call.1} parent=1 // pred_fallthru
      _
    // Predicated region
    $region34: #{tpu_custom_call.1} parent=1 // pred_check
      _
    $region35: #{tpu_custom_call.1} parent=1 // pred_check_branch
      %300 = sbr.rel (0) target = $region37
    $region36: #{tpu_custom_call.1} parent=1 // pred_region
      %301 = dma.done [#allocation4], 32
    $region37: #{tpu_custom_call.1} parent=1 // pred_fallthru
      _
    // Predicated region
    $region38: #{tpu_custom_call.1} parent=1 // pred_check
      _
    $region39: #{tpu_custom_call.1} parent=1 // pred_check_branch
      %303 = sbr.rel (0) target = $region41
    $region40: #{tpu_custom_call.1} parent=1 // pred_region
      %304 = dma.done [#allocation9], 32
    $region41: #{tpu_custom_call.1} parent=1 // pred_fallthru
      _
    %305 = vsyncpa [#allocation3], 1
    %306 = vsyncpa [#allocation6], 1
    %307 = vsyncpa [#allocation4], 1
    %308 = vsyncpa [#allocation9], 1

</llo_original>
